<compile_context>
chip_gen: v5e
topology: v5e:2x2
jax: 0.10.0
libtpu: 0.0.40
codegen_flags: <defaults>
</compile_context>

<pallas_src>
import jax
import jax.numpy as jnp
from jax.experimental import pallas as pl
from jax.experimental.pallas import tpu as pltpu


def _round_up(x, m):
    return (x + m - 1) // m * m


def _global_max_pool_kernel(x_ref, batch_ref, out_ref):
    """One (f_block, n_block) grid step.

    x_ref:     [tile_N, tile_F]  node-feature tile (streamed over the N grid axis)
    batch_ref: [tile_N, 1]       int32 graph id per node (-1 for padded rows)
    out_ref:   [G_pad, tile_F]   running per-graph max (VMEM-resident across the N axis)
    """
    n_step = pl.program_id(1)

    @pl.when(n_step == 0)
    def _init():
        out_ref[...] = jnp.full(out_ref.shape, -jnp.inf, dtype=out_ref.dtype)

    x = x_ref[...]                                  # [tile_N, tile_F]
    b = batch_ref[...]                              # [tile_N, 1] int32
    neg_inf = jnp.array(-jnp.inf, dtype=x.dtype)

    g_pad = out_ref.shape[0]

    # Per-graph masked max over the node axis of this tile.  Loop over graphs is a static
    # (trace-time) unroll; every intermediate is only [tile_N, tile_F], so node tiles can be
    # large without blowing VMEM.  Padded rows (batch == -1) never match any graph.
    rows = []
    for g in range(g_pad):
        mask = b == g                                            # [tile_N, 1] lane-broadcast
        masked = jnp.where(mask, x, neg_inf)                     # [tile_N, tile_F] VPU select
        rows.append(jnp.max(masked, axis=0, keepdims=True))      # [1, tile_F] sublane reduce
    tile_max = jnp.concatenate(rows, axis=0)                     # [G_pad, tile_F]

    out_ref[...] = jnp.maximum(out_ref[...], tile_max.astype(out_ref.dtype))


def global_max_pool(x, batch, num_graphs, *, tile_n=1024, tile_f=512):
    """x: [N, F] float, batch: [N] int, returns [num_graphs, F] per-graph max."""
    N, F = x.shape

    # Lane-dense feature padding and sublane-aligned graph padding.
    f_pad = _round_up(F, 128)
    g_pad = _round_up(max(int(num_graphs), 1), 8)

    # Feature tile: largest multiple of 128 (<= tile_f) that divides the padded F.
    tf = 128
    for cand in (1024, 512, 256, 128):
        if cand <= min(tile_f, f_pad) and f_pad % cand == 0:
            tf = cand
            break

    # Node tile: multiple of 8.  Live VMEM ~ tf * tn * (2*itemsize for double-buffered x
    # + ~8 bytes of select/max temporaries); keep it well inside the scoped-VMEM limit.
    itemsize = jnp.dtype(x.dtype).itemsize
    budget_bytes = 16 * 1024 * 1024
    tn_cap = max(8, (budget_bytes // (tf * (2 * itemsize + 8))) // 8 * 8)
    tn = min(tile_n, _round_up(N, 8), tn_cap)
    tn = max(8, tn // 8 * 8)
    n_pad = _round_up(N, tn)

    # Pad inputs; padded nodes get batch id -1 so they never match a graph row.
    x_p = jnp.pad(x, ((0, n_pad - N), (0, f_pad - F)))
    batch_p = jnp.pad(batch.astype(jnp.int32), (0, n_pad - N), constant_values=-1)
    batch_p = batch_p.reshape(n_pad, 1)

    grid = (f_pad // tf, n_pad // tn)

    out_padded = pl.pallas_call(
        _global_max_pool_kernel,
        out_shape=jax.ShapeDtypeStruct((g_pad, f_pad), x.dtype),
        grid=grid,
        in_specs=[
            pl.BlockSpec((tn, tf), lambda f, n: (n, f)),
            pl.BlockSpec((tn, 1), lambda f, n: (n, 0)),
        ],
        out_specs=pl.BlockSpec((g_pad, tf), lambda f, n: (0, f)),
        compiler_params=pltpu.CompilerParams(
            dimension_semantics=("parallel", "arbitrary"),
            vmem_limit_bytes=32 * 1024 * 1024,
        ),
    )(x_p, batch_p)

    # Drop graph / feature padding.  Empty graphs (no nodes) stay at -inf, matching
    # jax.ops.segment_max semantics.
    return out_padded[:num_graphs, :F]


if __name__ == "__main__":
    key = jax.random.PRNGKey(0)
    N, F, G = 16, 32, 4  # 16 nodes, 32 features, 4 graphs

    x = jax.random.normal(key, (N, F), dtype=jnp.float32)
    # deterministic batch assignment: 4 nodes per graph
    batch = jnp.repeat(jnp.arange(G, dtype=jnp.int32), N // G)

    out = jax.block_until_ready(global_max_pool(x, batch, G))

    ref = jax.ops.segment_max(x, batch, num_segments=G)
    assert out.shape == (G, F)
    assert jnp.allclose(out, ref, atol=1e-6, rtol=1e-6), "mismatch vs reference"

    print("KERNEL_OK")
</pallas_src>

<mosaic_0001>
module attributes {stable_mosaic.version = 11 : i64} {
  func.func @_global_max_pool_kernel(%arg0: i32, %arg1: i32, %arg2: memref<16x128xf32, #tpu.memory_space<vmem>>, %arg3: memref<16x1xi32, #tpu.memory_space<vmem>>, %arg4: memref<8x128xf32, #tpu.memory_space<vmem>>) attributes {dimension_semantics = [#tpu.dimension_semantics<parallel>, #tpu.dimension_semantics<arbitrary>], iteration_bounds = array<i64: 1, 1>, scalar_prefetch = 0 : i64, scratch_operands = 0 : i64, tpu.core_type = #tpu.core_type<tc>, window_params = [{transform_indices = @transform_0, window_bounds = array<i64: 16, 128>}, {transform_indices = @transform_1, window_bounds = array<i64: 16, 1>}, {transform_indices = @transform_2, window_bounds = array<i64: 8, 128>}]} {
    %c0_i32 = arith.constant 0 : i32
    %0 = arith.cmpi eq, %arg1, %c0_i32 : i32
    %1 = arith.extui %0 : i1 to i32
    %c0_i32_0 = arith.constant 0 : i32
    %2 = arith.cmpi ne, %1, %c0_i32_0 : i32
    scf.if %2 {
      %cst_24 = arith.constant 0xFF800000 : f32
      %73 = vector.broadcast %cst_24 : f32 to vector<8x128xf32>
      %c0_25 = arith.constant 0 : index
      %c0_26 = arith.constant 0 : index
      %74 = vector.load %arg4[%c0_25, %c0_26] : memref<8x128xf32, #tpu.memory_space<vmem>>, vector<8x128xf32>
      tpu.vector_store %arg4[%c0_25, %c0_26], %73 {strides = array<i32>} : memref<8x128xf32, #tpu.memory_space<vmem>>, vector<8x128xf32>,
    } else {
    }
    %c0 = arith.constant 0 : index
    %c0_1 = arith.constant 0 : index
    %3 = vector.load %arg2[%c0, %c0_1] : memref<16x128xf32, #tpu.memory_space<vmem>>, vector<16x128xf32>
    %c0_2 = arith.constant 0 : index
    %c0_3 = arith.constant 0 : index
    %4 = vector.load %arg3[%c0_2, %c0_3] : memref<16x1xi32, #tpu.memory_space<vmem>>, vector<16x1xi32>
    %c0_i32_4 = arith.constant 0 : i32
    %5 = vector.broadcast %c0_i32_4 : i32 to vector<16x1xi32>
    %6 = arith.cmpi eq, %4, %5 : vector<16x1xi32>
    %cst = arith.constant 0xFF800000 : f32
    %7 = vector.shape_cast %6 : vector<16x1xi1> to vector<16x1xi1>
    %8 = vector.broadcast %7 : vector<16x1xi1> to vector<16x128xi1>
    %9 = vector.broadcast %cst : f32 to vector<16x128xf32>
    %10 = arith.select %8, %3, %9 : vector<16x128xi1>, vector<16x128xf32>
    %cst_5 = arith.constant dense<0xFF800000> : vector<128xf32>
    %11 = vector.multi_reduction <maximumf>, %10, %cst_5 [0] : vector<16x128xf32> to vector<128xf32>
    %12 = vector.shape_cast %11 : vector<128xf32> to vector<1x128xf32>
    %c1_i32 = arith.constant 1 : i32
    %13 = vector.broadcast %c1_i32 : i32 to vector<16x1xi32>
    %14 = arith.cmpi eq, %4, %13 : vector<16x1xi32>
    %cst_6 = arith.constant 0xFF800000 : f32
    %15 = vector.shape_cast %14 : vector<16x1xi1> to vector<16x1xi1>
    %16 = vector.broadcast %15 : vector<16x1xi1> to vector<16x128xi1>
    %17 = vector.broadcast %cst_6 : f32 to vector<16x128xf32>
    %18 = arith.select %16, %3, %17 : vector<16x128xi1>, vector<16x128xf32>
    %cst_7 = arith.constant dense<0xFF800000> : vector<128xf32>
    %19 = vector.multi_reduction <maximumf>, %18, %cst_7 [0] : vector<16x128xf32> to vector<128xf32>
    %20 = vector.shape_cast %19 : vector<128xf32> to vector<1x128xf32>
    %c2_i32 = arith.constant 2 : i32
    %21 = vector.broadcast %c2_i32 : i32 to vector<16x1xi32>
    %22 = arith.cmpi eq, %4, %21 : vector<16x1xi32>
    %cst_8 = arith.constant 0xFF800000 : f32
    %23 = vector.shape_cast %22 : vector<16x1xi1> to vector<16x1xi1>
    %24 = vector.broadcast %23 : vector<16x1xi1> to vector<16x128xi1>
    %25 = vector.broadcast %cst_8 : f32 to vector<16x128xf32>
    %26 = arith.select %24, %3, %25 : vector<16x128xi1>, vector<16x128xf32>
    %cst_9 = arith.constant dense<0xFF800000> : vector<128xf32>
    %27 = vector.multi_reduction <maximumf>, %26, %cst_9 [0] : vector<16x128xf32> to vector<128xf32>
    %28 = vector.shape_cast %27 : vector<128xf32> to vector<1x128xf32>
    %c3_i32 = arith.constant 3 : i32
    %29 = vector.broadcast %c3_i32 : i32 to vector<16x1xi32>
    %30 = arith.cmpi eq, %4, %29 : vector<16x1xi32>
    %cst_10 = arith.constant 0xFF800000 : f32
    %31 = vector.shape_cast %30 : vector<16x1xi1> to vector<16x1xi1>
    %32 = vector.broadcast %31 : vector<16x1xi1> to vector<16x128xi1>
    %33 = vector.broadcast %cst_10 : f32 to vector<16x128xf32>
    %34 = arith.select %32, %3, %33 : vector<16x128xi1>, vector<16x128xf32>
    %cst_11 = arith.constant dense<0xFF800000> : vector<128xf32>
    %35 = vector.multi_reduction <maximumf>, %34, %cst_11 [0] : vector<16x128xf32> to vector<128xf32>
    %36 = vector.shape_cast %35 : vector<128xf32> to vector<1x128xf32>
    %c4_i32 = arith.constant 4 : i32
    %37 = vector.broadcast %c4_i32 : i32 to vector<16x1xi32>
    %38 = arith.cmpi eq, %4, %37 : vector<16x1xi32>
    %cst_12 = arith.constant 0xFF800000 : f32
    %39 = vector.shape_cast %38 : vector<16x1xi1> to vector<16x1xi1>
    %40 = vector.broadcast %39 : vector<16x1xi1> to vector<16x128xi1>
    %41 = vector.broadcast %cst_12 : f32 to vector<16x128xf32>
    %42 = arith.select %40, %3, %41 : vector<16x128xi1>, vector<16x128xf32>
    %cst_13 = arith.constant dense<0xFF800000> : vector<128xf32>
    %43 = vector.multi_reduction <maximumf>, %42, %cst_13 [0] : vector<16x128xf32> to vector<128xf32>
    %44 = vector.shape_cast %43 : vector<128xf32> to vector<1x128xf32>
    %c5_i32 = arith.constant 5 : i32
    %45 = vector.broadcast %c5_i32 : i32 to vector<16x1xi32>
    %46 = arith.cmpi eq, %4, %45 : vector<16x1xi32>
    %cst_14 = arith.constant 0xFF800000 : f32
    %47 = vector.shape_cast %46 : vector<16x1xi1> to vector<16x1xi1>
    %48 = vector.broadcast %47 : vector<16x1xi1> to vector<16x128xi1>
    %49 = vector.broadcast %cst_14 : f32 to vector<16x128xf32>
    %50 = arith.select %48, %3, %49 : vector<16x128xi1>, vector<16x128xf32>
    %cst_15 = arith.constant dense<0xFF800000> : vector<128xf32>
    %51 = vector.multi_reduction <maximumf>, %50, %cst_15 [0] : vector<16x128xf32> to vector<128xf32>
    %52 = vector.shape_cast %51 : vector<128xf32> to vector<1x128xf32>
    %c6_i32 = arith.constant 6 : i32
    %53 = vector.broadcast %c6_i32 : i32 to vector<16x1xi32>
    %54 = arith.cmpi eq, %4, %53 : vector<16x1xi32>
    %cst_16 = arith.constant 0xFF800000 : f32
    %55 = vector.shape_cast %54 : vector<16x1xi1> to vector<16x1xi1>
    %56 = vector.broadcast %55 : vector<16x1xi1> to vector<16x128xi1>
    %57 = vector.broadcast %cst_16 : f32 to vector<16x128xf32>
    %58 = arith.select %56, %3, %57 : vector<16x128xi1>, vector<16x128xf32>
    %cst_17 = arith.constant dense<0xFF800000> : vector<128xf32>
    %59 = vector.multi_reduction <maximumf>, %58, %cst_17 [0] : vector<16x128xf32> to vector<128xf32>
    %60 = vector.shape_cast %59 : vector<128xf32> to vector<1x128xf32>
    %c7_i32 = arith.constant 7 : i32
    %61 = vector.broadcast %c7_i32 : i32 to vector<16x1xi32>
    %62 = arith.cmpi eq, %4, %61 : vector<16x1xi32>
    %cst_18 = arith.constant 0xFF800000 : f32
    %63 = vector.shape_cast %62 : vector<16x1xi1> to vector<16x1xi1>
    %64 = vector.broadcast %63 : vector<16x1xi1> to vector<16x128xi1>
    %65 = vector.broadcast %cst_18 : f32 to vector<16x128xf32>
    %66 = arith.select %64, %3, %65 : vector<16x128xi1>, vector<16x128xf32>
    %cst_19 = arith.constant dense<0xFF800000> : vector<128xf32>
    %67 = vector.multi_reduction <maximumf>, %66, %cst_19 [0] : vector<16x128xf32> to vector<128xf32>
    %68 = vector.shape_cast %67 : vector<128xf32> to vector<1x128xf32>
    %69 = tpu.concatenate %12, %20, %28, %36, %44, %52, %60, %68 in 0 : vector<1x128xf32>, vector<1x128xf32>, vector<1x128xf32>, vector<1x128xf32>, vector<1x128xf32>, vector<1x128xf32>, vector<1x128xf32>, vector<1x128xf32> -> vector<8x128xf32>
    %c0_20 = arith.constant 0 : index
    %c0_21 = arith.constant 0 : index
    %70 = vector.load %arg4[%c0_20, %c0_21] : memref<8x128xf32, #tpu.memory_space<vmem>>, vector<8x128xf32>
    %71 = arith.maximumf %70, %69 : vector<8x128xf32>
    %c0_22 = arith.constant 0 : index
    %c0_23 = arith.constant 0 : index
    %72 = vector.load %arg4[%c0_22, %c0_23] : memref<8x128xf32, #tpu.memory_space<vmem>>, vector<8x128xf32>
    tpu.vector_store %arg4[%c0_22, %c0_23], %71 {strides = array<i32>} : memref<8x128xf32, #tpu.memory_space<vmem>>, vector<8x128xf32>,
    return
  }
  func.func @transform_0(%arg0: i32, %arg1: i32) -> (i32, i32) {
    %c0_i32 = arith.constant 0 : i32
    return %arg1, %arg0 : i32, i32
  }
  func.func @transform_1(%arg0: i32, %arg1: i32) -> (i32, i32) {
    %c0_i32 = arith.constant 0 : i32
    %c0_i32_0 = arith.constant 0 : i32
    return %arg1, %c0_i32 : i32, i32
  }
  func.func @transform_2(%arg0: i32, %arg1: i32) -> (i32, i32) {
    %c0_i32 = arith.constant 0 : i32
    %c0_i32_0 = arith.constant 0 : i32
    return %c0_i32, %arg0 : i32, i32
  }
}

</mosaic_0001>

<llo_original>
// kernel: tpu_custom_call.1
$region0: #{tpu_custom_call.1}
  #allocation0 [shape = 'u32[]', space=smem, size = 0x4, offset = 0x4, fixed_abs, tag = 'smem constant byte address 0x4 - core index']
  #allocation1 [shape = 'u32[72,128]{1,0:T(1,128)}', space=vmem, size = 0x9000, scoped, tag = 'internal scratch']
  %s0 = inlined_call_operand.vmem [shape: f32[16,128], index: 0, kind: input, shape index: {}]
  %s1 = inlined_call_operand.vmem [shape: s32[16,1], index: 1, kind: input, shape index: {}]
  %s2 = inlined_call_operand.hbm [shape: f32[8,128], index: 2, kind: output, shape index: {}]
  %s3 = sld [smem:[#allocation0]]
  $region22: #{tpu_custom_call.1} parent=0
    _
  %s5 = ssub.s32 1, %s3
  %s6 = scalar_select 0, %s5, %s3
  $region1: #{tpu_custom_call.1} parent=0
    #allocation2 [shape = 'u8[4096]{0}', space=vmem, size = 0x1000, scoped, tag = 'output window, operand 0, single buffered']
    #allocation3 [shape = 's32[1]{0}', space=sflag, size = 0x4, scoped, tag = 'scoped memory for tpu_custom_call.1']
    %7 = vsyncpa [#allocation3], 0
    // Predicated region
    $region2: #{tpu_custom_call.1} parent=1 // pred_check
      _
    $region3: #{tpu_custom_call.1} parent=1 // pred_check_branch
      %9 = sbr.rel (0) target = $region5
    $region4: #{tpu_custom_call.1} parent=1 // pred_region
      _
    $region5: #{tpu_custom_call.1} parent=1 // pred_fallthru
      _
    // Predicated region
    $region6: #{tpu_custom_call.1} parent=1 // pred_check
      _
    $region7: #{tpu_custom_call.1} parent=1 // pred_check_branch
      %11 = sbr.rel (0) target = $region9
    $region8: #{tpu_custom_call.1} parent=1 // pred_region
      _
    $region9: #{tpu_custom_call.1} parent=1 // pred_fallthru
      _
    %p12 = scmp.eq.s32.totalorder 0, 0
    // Predicated region
    $region10: #{tpu_custom_call.1} parent=1 // pred_check
      %p13 = pneg %p12
    $region11: #{tpu_custom_call.1} parent=1 // pred_check_branch
      %15 = sbr.rel (%p13) target = $region13
    $region12: #{tpu_custom_call.1} parent=1 // pred_region
      %16 = vst [vmem:[#allocation2] sm:$0xff] -inf
    $region13: #{tpu_custom_call.1} parent=1 // pred_fallthru
      _
    %v17 = vld [vmem:[%s0] sm:$0xff]
    %v18 = vld [vmem:[%s0 + $0x8] sm:$0xff]
    %v19 = vld [vmem:[%s1] sm:$0xff]
    %v20 = vld [vmem:[%s1 + $0x8] sm:$0xff]
    %vm21 = vcmp.eq.s32.totalorder %v19, 0
    %vm22 = vcmp.eq.s32.totalorder %v20, 0
    %v23 = vsel %vm21, 1, 0
    %v24 = vsel %vm22, 1, 0
    %25 = vset.pattern.permute.xlu0 0
    %26 = vperm.xlu0 %25, %v23
    %v27 = vpop.permute.xlu0 %26
    %28 = vset.pattern.permute.xlu0 0
    %29 = vperm.xlu0 %28, %v24
    %v30 = vpop.permute.xlu0 %29
    %vm31 = vcmp.eq.s32.totalorder %v27, 1
    %vm32 = vcmp.eq.s32.totalorder %v30, 1
    %v33 = vsel %vm31, %v17, -inf
    %v34 = vsel %vm32, %v18, -inf
    %v35 = vmax.f32 %v33, %v34
    %v36 = vrot.slane %v35, 4
    %v37 = vmax.f32 %v35, %v36
    %v38 = vrot.slane %v37, 2
    %v39 = vmax.f32 %v37, %v38
    %v40 = vrot.slane %v39, 1
    %v41 = vmax.f32 %v39, %v40
    %vm42 = vcmp.eq.s32.totalorder %v19, 1
    %vm43 = vcmp.eq.s32.totalorder %v20, 1
    %v44 = vsel %vm42, 1, 0
    %v45 = vsel %vm43, 1, 0
    %46 = vset.pattern.permute.xlu0 0
    %47 = vperm.xlu0 %46, %v44
    %v48 = vpop.permute.xlu0 %47
    %49 = vset.pattern.permute.xlu0 0
    %50 = vperm.xlu0 %49, %v45
    %v51 = vpop.permute.xlu0 %50
    %vm52 = vcmp.eq.s32.totalorder %v48, 1
    %vm53 = vcmp.eq.s32.totalorder %v51, 1
    %v54 = vsel %vm52, %v17, -inf
    %v55 = vsel %vm53, %v18, -inf
    %v56 = vmax.f32 %v54, %v55
    %v57 = vrot.slane %v56, 4
    %v58 = vmax.f32 %v56, %v57
    %v59 = vrot.slane %v58, 2
    %v60 = vmax.f32 %v58, %v59
    %v61 = vrot.slane %v60, 1
    %v62 = vmax.f32 %v60, %v61
    %vm63 = vcmp.eq.s32.totalorder %v19, 2
    %vm64 = vcmp.eq.s32.totalorder %v20, 2
    %v65 = vsel %vm63, 1, 0
    %v66 = vsel %vm64, 1, 0
    %67 = vset.pattern.permute.xlu0 0
    %68 = vperm.xlu0 %67, %v65
    %v69 = vpop.permute.xlu0 %68
    %70 = vset.pattern.permute.xlu0 0
    %71 = vperm.xlu0 %70, %v66
    %v72 = vpop.permute.xlu0 %71
    %vm73 = vcmp.eq.s32.totalorder %v69, 1
    %vm74 = vcmp.eq.s32.totalorder %v72, 1
    %v75 = vsel %vm73, %v17, -inf
    %v76 = vsel %vm74, %v18, -inf
    %v77 = vmax.f32 %v75, %v76
    %v78 = vrot.slane %v77, 4
    %v79 = vmax.f32 %v77, %v78
    %v80 = vrot.slane %v79, 2
    %v81 = vmax.f32 %v79, %v80
    %v82 = vrot.slane %v81, 1
    %v83 = vmax.f32 %v81, %v82
    %vm84 = vcmp.eq.s32.totalorder %v19, 3
    %vm85 = vcmp.eq.s32.totalorder %v20, 3
    %v86 = vsel %vm84, 1, 0
    %v87 = vsel %vm85, 1, 0
    %88 = vset.pattern.permute.xlu0 0
    %89 = vperm.xlu0 %88, %v86
    %v90 = vpop.permute.xlu0 %89
    %91 = vset.pattern.permute.xlu0 0
    %92 = vperm.xlu0 %91, %v87
    %v93 = vpop.permute.xlu0 %92
    %vm94 = vcmp.eq.s32.totalorder %v90, 1
    %vm95 = vcmp.eq.s32.totalorder %v93, 1
    %v96 = vsel %vm94, %v17, -inf
    %v97 = vsel %vm95, %v18, -inf
    %v98 = vmax.f32 %v96, %v97
    %v99 = vrot.slane %v98, 4
    %v100 = vmax.f32 %v98, %v99
    %v101 = vrot.slane %v100, 2
    %v102 = vmax.f32 %v100, %v101
    %v103 = vrot.slane %v102, 1
    %v104 = vmax.f32 %v102, %v103
    %vm105 = vcmp.eq.s32.totalorder %v19, 4
    %vm106 = vcmp.eq.s32.totalorder %v20, 4
    %v107 = vsel %vm105, 1, 0
    %v108 = vsel %vm106, 1, 0
    %109 = vset.pattern.permute.xlu0 0
    %110 = vperm.xlu0 %109, %v107
    %v111 = vpop.permute.xlu0 %110
    %112 = vset.pattern.permute.xlu0 0
    %113 = vperm.xlu0 %112, %v108
    %v114 = vpop.permute.xlu0 %113
    %vm115 = vcmp.eq.s32.totalorder %v111, 1
    %vm116 = vcmp.eq.s32.totalorder %v114, 1
    %v117 = vsel %vm115, %v17, -inf
    %v118 = vsel %vm116, %v18, -inf
    %v119 = vmax.f32 %v117, %v118
    %v120 = vrot.slane %v119, 4
    %v121 = vmax.f32 %v119, %v120
    %v122 = vrot.slane %v121, 2
    %v123 = vmax.f32 %v121, %v122
    %v124 = vrot.slane %v123, 1
    %v125 = vmax.f32 %v123, %v124
    %vm126 = vcmp.eq.s32.totalorder %v19, 5
    %vm127 = vcmp.eq.s32.totalorder %v20, 5
    %v128 = vsel %vm126, 1, 0
    %v129 = vsel %vm127, 1, 0
    %130 = vset.pattern.permute.xlu0 0
    %131 = vperm.xlu0 %130, %v128
    %v132 = vpop.permute.xlu0 %131
    %133 = vset.pattern.permute.xlu0 0
    %134 = vperm.xlu0 %133, %v129
    %v135 = vpop.permute.xlu0 %134
    %vm136 = vcmp.eq.s32.totalorder %v132, 1
    %vm137 = vcmp.eq.s32.totalorder %v135, 1
    %v138 = vsel %vm136, %v17, -inf
    %v139 = vsel %vm137, %v18, -inf
    %v140 = vmax.f32 %v138, %v139
    %v141 = vrot.slane %v140, 4
    %v142 = vmax.f32 %v140, %v141
    %v143 = vrot.slane %v142, 2
    %v144 = vmax.f32 %v142, %v143
    %v145 = vrot.slane %v144, 1
    %v146 = vmax.f32 %v144, %v145
    %vm147 = vcmp.eq.s32.totalorder %v19, 6
    %vm148 = vcmp.eq.s32.totalorder %v20, 6
    %v149 = vsel %vm147, 1, 0
    %v150 = vsel %vm148, 1, 0
    %151 = vset.pattern.permute.xlu0 0
    %152 = vperm.xlu0 %151, %v149
    %v153 = vpop.permute.xlu0 %152
    %154 = vset.pattern.permute.xlu0 0
    %155 = vperm.xlu0 %154, %v150
    %v156 = vpop.permute.xlu0 %155
    %vm157 = vcmp.eq.s32.totalorder %v153, 1
    %vm158 = vcmp.eq.s32.totalorder %v156, 1
    %v159 = vsel %vm157, %v17, -inf
    %v160 = vsel %vm158, %v18, -inf
    %v161 = vmax.f32 %v159, %v160
    %v162 = vrot.slane %v161, 4
    %v163 = vmax.f32 %v161, %v162
    %v164 = vrot.slane %v163, 2
    %v165 = vmax.f32 %v163, %v164
    %v166 = vrot.slane %v165, 1
    %v167 = vmax.f32 %v165, %v166
    %vm168 = vcmp.eq.s32.totalorder %v19, 7
    %vm169 = vcmp.eq.s32.totalorder %v20, 7
    %v170 = vsel %vm168, 1, 0
    %v171 = vsel %vm169, 1, 0
    %172 = vset.pattern.permute.xlu0 0
    %173 = vperm.xlu0 %172, %v170
    %v174 = vpop.permute.xlu0 %173
    %175 = vset.pattern.permute.xlu0 0
    %176 = vperm.xlu0 %175, %v171
    %v177 = vpop.permute.xlu0 %176
    %vm178 = vcmp.eq.s32.totalorder %v174, 1
    %vm179 = vcmp.eq.s32.totalorder %v177, 1
    %v180 = vsel %vm178, %v17, -inf
    %v181 = vsel %vm179, %v18, -inf
    %v182 = vmax.f32 %v180, %v181
    %v183 = vrot.slane %v182, 4
    %v184 = vmax.f32 %v182, %v183
    %v185 = vrot.slane %v184, 2
    %v186 = vmax.f32 %v184, %v185
    %v187 = vrot.slane %v186, 1
    %v188 = vmax.f32 %v186, %v187
    %vm189 = vcmask 1040384
    %v190 = vsel %vm189, %v41, %v62
    %vm191 = vcmask 1041408
    %v192 = vsel %vm191, %v190, %v83
    %vm193 = vcmask 1042432
    %v194 = vsel %vm193, %v192, %v104
    %vm195 = vcmask 1043456
    %v196 = vsel %vm195, %v194, %v125
    %vm197 = vcmask 1044480
    %v198 = vsel %vm197, %v196, %v146
    %vm199 = vcmask 1045504
    %v200 = vsel %vm199, %v198, %v167
    %vm201 = vcmask 1046528
    %v202 = vsel %vm201, %v200, %v188
    %v203 = vld [vmem:[#allocation2] sm:$0xff]
    %v204 = vmax.f32 %v203, %v202
    %205 = vst [vmem:[#allocation2] sm:$0xff] %v204
    // Predicated region
    $region14: #{tpu_custom_call.1} parent=1 // pred_check
      _
    $region15: #{tpu_custom_call.1} parent=1 // pred_check_branch
      %207 = sbr.rel (0) target = $region17
    $region16: #{tpu_custom_call.1} parent=1 // pred_region
      %209 = vsyncadd [#allocation3], 0
      %s211 = sshll.u32 [#allocation2], 4
      %s212 = int_to_ptr.vmem [resolvable:$true] %s211
      %s213 = sshll.u32 %s2, 4
      %s214 = int_to_ptr.hbm [resolvable:$true] %s213
      %216 = dma.vmem_to_hbm [thread:$0]  %s212, 128, %s214, [#allocation3]
    $region17: #{tpu_custom_call.1} parent=1 // pred_fallthru
      _
    // Predicated region
    $region18: #{tpu_custom_call.1} parent=1 // pred_check
      _
    $region19: #{tpu_custom_call.1} parent=1 // pred_check_branch
      %218 = sbr.rel (0) target = $region21
    $region20: #{tpu_custom_call.1} parent=1 // pred_region
      %220 = dma.done [#allocation3], 128
    $region21: #{tpu_custom_call.1} parent=1 // pred_fallthru
      _
    %221 = vsyncpa [#allocation3], 1

</llo_original>
